<compile_context>
chip_gen: v7x
topology: tpu7x:2x2x1
jax: 0.10.0
libtpu: 0.0.40
codegen_flags: <defaults>
</compile_context>

<pallas_src>
import math
import functools

import jax
import jax.numpy as jnp
from jax import lax
from jax.experimental import pallas as pl
from jax.experimental.pallas import tpu as pltpu


def build_pe_table(d_model: int, max_len: int = 5000) -> jnp.ndarray:
    """Deterministic sinusoidal table, identical to the PyTorch __init__."""
    position = jnp.arange(max_len, dtype=jnp.float32)[:, None]            # (L, 1)
    div_term = jnp.exp(
        jnp.arange(0, d_model, 2, dtype=jnp.float32)
        * (-math.log(10000.0) / d_model)
    )                                                                      # (D/2,)
    pe = jnp.zeros((max_len, d_model), dtype=jnp.float32)
    pe = pe.at[:, 0::2].set(jnp.sin(position * div_term))
    pe = pe.at[:, 1::2].set(jnp.cos(position * div_term))
    return pe                                                              # (L, D)


def _mix32(x):
    """lowbias32-style integer mixer (xor/shift/mul only; VPU + interpret safe)."""
    x = x ^ (x >> 16)
    x = x * jnp.uint32(0x7FEB352D)
    x = x ^ (x >> 15)
    x = x * jnp.uint32(0x846CA68B)
    x = x ^ (x >> 16)
    return x


def _make_kernel(train: bool, p: float, bb: int, tile: int, total_cols: int):
    # Integer-domain dropout threshold (24 random bits) + precomputed scale.
    keep_thresh = int(round(min(max(p, 0.0), 1.0) * (1 << 24)))
    inv_keep = (1.0 / (1.0 - p)) if p < 1.0 else 0.0

    def kernel(seed_ref, x_ref, pe_ref, o_ref):
        # x_ref: (bb, tile), pe_ref: (1, tile) -> broadcast add over batch rows.
        val = x_ref[...] + pe_ref[...]
        if train and p > 0.0:
            if p >= 1.0:
                val = jnp.zeros_like(val)
            else:
                # Inverted dropout.  Counter-based hash keyed on the *global*
                # element index so every batch row / tile gets a unique stream.
                # TODO(synk): RNG stream cannot bit-match torch's dropout mask.
                row = pl.program_id(0) * bb + lax.broadcasted_iota(
                    jnp.int32, (bb, tile), 0)
                col = pl.program_id(1) * tile + lax.broadcasted_iota(
                    jnp.int32, (bb, tile), 1)
                gidx = (row * total_cols + col).astype(jnp.uint32)
                key = gidx ^ (seed_ref[0].astype(jnp.uint32)
                              * jnp.uint32(0x9E3779B9))
                r24 = (_mix32(key) >> 8).astype(jnp.int32)     # 24 uniform bits
                keep = r24 >= jnp.int32(keep_thresh)           # P(keep) = 1 - p
                val = jnp.where(keep, val * inv_keep, jnp.zeros_like(val))
        o_ref[...] = val.astype(o_ref.dtype)

    return kernel


def _choose_blocks(B: int, total: int, elem_bytes: int,
                   target_bytes: int = 2 * 1024 * 1024):
    """Pick (batch_rows, lane_tile) giving ~target_bytes blocks that satisfy the
    TPU (8, 128) block-shape rules (dim is a multiple, or equals the full dim)."""
    target_elems = max(256, target_bytes // elem_bytes)
    bb = B if B <= 8 else 8
    per_row = max(128, target_elems // bb)
    if total <= per_row:
        tile = total                              # whole row fits in one block
        if B > 8:                                 # tiny rows: pack more batch rows
            rows = min(B, max(8, target_elems // max(tile, 1)))
            bb = max(8, (rows // 8) * 8)
    else:
        tile = max(128, (per_row // 128) * 128)   # lane-dense tile
    return bb, tile


@functools.partial(jax.jit, static_argnames=("p", "train"))
def positional_encoding(x, pe, *, p: float = 0.1, train: bool = False, seed: int = 0):
    """x: (B, S, D);  pe: (max_len, D).  Matches PositionalEncoding.forward."""
    B, S, D = x.shape
    total = S * D
    x2 = x.reshape(B, total)                             # free (row-major) reshape
    pe2 = pe[:S].reshape(1, total).astype(x.dtype)       # pe[:, :S, :] source

    bb, tile = _choose_blocks(B, total, jnp.dtype(x.dtype).itemsize)
    grid = (pl.cdiv(B, bb), pl.cdiv(total, tile))

    grid_spec = pltpu.PrefetchScalarGridSpec(
        num_scalar_prefetch=1,                           # dropout seed in SMEM
        grid=grid,
        in_specs=[
            pl.BlockSpec((bb, tile), lambda bi, ti, seed_ref: (bi, ti)),  # x
            pl.BlockSpec((1, tile), lambda bi, ti, seed_ref: (0, ti)),    # pe
        ],
        out_specs=pl.BlockSpec((bb, tile), lambda bi, ti, seed_ref: (bi, ti)),
    )

    out2 = pl.pallas_call(
        _make_kernel(train, float(p), bb, tile, total),
        out_shape=jax.ShapeDtypeStruct((B, total), x.dtype),
        grid_spec=grid_spec,
        compiler_params=pltpu.CompilerParams(
            dimension_semantics=("parallel", "parallel"),
            vmem_limit_bytes=32 * 1024 * 1024,
        ),
    )(jnp.asarray([seed], dtype=jnp.int32), x2, pe2)

    return out2.reshape(B, S, D)


if __name__ == "__main__":
    B, S, D = 2, 8, 32          # batch, seq, d_model
    key = jax.random.PRNGKey(0)
    x = jax.random.normal(key, (B, S, D), dtype=jnp.float32)

    pe = build_pe_table(d_model=D, max_len=5000)

    # Eval mode (dropout = identity): deterministic, checked against reference.
    out = jax.block_until_ready(positional_encoding(x, pe, p=0.1, train=False))
    ref = x + pe[None, :S, :]
    assert out.shape == (B, S, D)
    assert jnp.allclose(out, ref, atol=1e-6, rtol=1e-6), "eval-mode mismatch vs reference"

    # Train mode: inverted dropout -> every element is either 0 or ref/(1-p).
    p = 0.1
    out_tr = jax.block_until_ready(
        positional_encoding(x, pe, p=p, train=True, seed=123)
    )
    assert out_tr.shape == (B, S, D)
    scaled = ref * (1.0 / (1.0 - p))
    ok = jnp.isclose(out_tr, 0.0, atol=1e-6) | jnp.isclose(
        out_tr, scaled, rtol=1e-5, atol=1e-6)
    assert bool(jnp.all(ok)), "train-mode values must be 0 or ref/(1-p)"
    drop_frac = float(jnp.mean(jnp.isclose(out_tr, 0.0, atol=1e-6)))
    assert 0.01 < drop_frac < 0.4, f"implausible dropout rate {drop_frac}"

    print("KERNEL_OK")
</pallas_src>

<mosaic_0001>
module attributes {stable_mosaic.version = 11 : i64} {
  func.func @kernel(%arg0: i32, %arg1: i32, %arg2: memref<1xi32, #tpu.memory_space<smem>>, %arg3: memref<2x256xf32, #tpu.memory_space<vmem>>, %arg4: memref<1x256xf32, #tpu.memory_space<vmem>>, %arg5: memref<2x256xf32, #tpu.memory_space<vmem>>) attributes {dimension_semantics = [#tpu.dimension_semantics<parallel>, #tpu.dimension_semantics<parallel>], iteration_bounds = array<i64: 1, 1>, scalar_prefetch = 1 : i64, scratch_operands = 0 : i64, tpu.core_type = #tpu.core_type<tc>, window_params = [{transform_indices = @transform_0, window_bounds = array<i64: 2, 256>}, {transform_indices = @transform_1, window_bounds = array<i64: 1, 256>}, {transform_indices = @transform_2, window_bounds = array<i64: 2, 256>}]} {
    %c0 = arith.constant 0 : index
    %c0_0 = arith.constant 0 : index
    %0 = vector.load %arg3[%c0, %c0_0] : memref<2x256xf32, #tpu.memory_space<vmem>>, vector<2x256xf32>
    %c0_1 = arith.constant 0 : index
    %c0_2 = arith.constant 0 : index
    %1 = vector.load %arg4[%c0_1, %c0_2] : memref<1x256xf32, #tpu.memory_space<vmem>>, vector<1x256xf32>
    %2 = vector.broadcast %1 : vector<1x256xf32> to vector<2x256xf32>
    %3 = arith.addf %0, %2 : vector<2x256xf32>
    %c0_3 = arith.constant 0 : index
    %c0_4 = arith.constant 0 : index
    %4 = vector.load %arg5[%c0_3, %c0_4] : memref<2x256xf32, #tpu.memory_space<vmem>>, vector<2x256xf32>
    tpu.vector_store %arg5[%c0_3, %c0_4], %3 {strides = array<i32>} : memref<2x256xf32, #tpu.memory_space<vmem>>, vector<2x256xf32>,
    return
  }
  func.func @transform_0(%arg0: i32, %arg1: i32, %arg2: memref<1xi32, #tpu.memory_space<smem>>) -> (i32, i32) {
    %c0_i32 = arith.constant 0 : i32
    return %arg0, %arg1 : i32, i32
  }
  func.func @transform_1(%arg0: i32, %arg1: i32, %arg2: memref<1xi32, #tpu.memory_space<smem>>) -> (i32, i32) {
    %c0_i32 = arith.constant 0 : i32
    %c0_i32_0 = arith.constant 0 : i32
    return %c0_i32, %arg1 : i32, i32
  }
  func.func @transform_2(%arg0: i32, %arg1: i32, %arg2: memref<1xi32, #tpu.memory_space<smem>>) -> (i32, i32) {
    %c0_i32 = arith.constant 0 : i32
    return %arg0, %arg1 : i32, i32
  }
}

</mosaic_0001>

<llo_original>
// kernel: positional_encoding.1
$region0: #{positional_encoding.1}
  #allocation0 [shape = 'u32[]', space=smem, size = 0x4, offset = 0x4, fixed_abs, tag = 'smem constant byte address 0x4 - core index']
  #allocation1 [shape = 'u32[144,128]{1,0:T(1,128)}', space=vmem, size = 0x12000, scoped, tag = 'internal scratch']
  #allocation2 [shape = 's32[1]{0}', space=sflag, size = 0x4, scoped, tag = 'scoped memory for positional_encoding.1']
  #allocation3 [shape = 's32[1]{0:T(128)S(6)}', space=smem, size = 0x200, scoped, tag = 'prefetched SMEM operand 0']
  %s0 = inlined_call_operand.<no memory space> [shape: s32[1], index: 0, kind: input, shape index: {}]
  %s1 = inlined_call_operand.vmem [shape: f32[2,256], index: 1, kind: input, shape index: {}]
  %s2 = inlined_call_operand.vmem [shape: f32[1,256], index: 2, kind: input, shape index: {}]
  %s3 = inlined_call_operand.vmem [shape: f32[2,256], index: 3, kind: output, shape index: {}]
  %s4 = sld [smem:[#allocation0]]
  $region18: #{positional_encoding.1} parent=0
    _
  %s6 = ssub.s32 1, %s4
  %s7 = scalar_select 0, %s6, %s4
  %8 = sst [smem:[#allocation3]] %s0
  // Predicated region
  $region2: #{positional_encoding.1} parent=0 // pred_check
    _
  $region3: #{positional_encoding.1} parent=0 // pred_check_branch
    %10 = sbr.rel (0) target = $region5
  $region4: #{positional_encoding.1} parent=0 // pred_region
    _
  $region5: #{positional_encoding.1} parent=0 // pred_fallthru
    _
  // Predicated region
  $region6: #{positional_encoding.1} parent=0 // pred_check
    _
  $region7: #{positional_encoding.1} parent=0 // pred_check_branch
    %12 = sbr.rel (0) target = $region9
  $region8: #{positional_encoding.1} parent=0 // pred_region
    _
  $region9: #{positional_encoding.1} parent=0 // pred_fallthru
    _
  %v13 = vld [vmem:[%s1] sm:$0xf]
  %v14 = vld [vmem:[%s2] sm:$0x3]
  %v16 = vlaneseq
  %v17 = vshrl.u32 %v16, 7
  %v18 = vsub.s32 0, %v17
  %v19 = vrot.slane %v14, %v18
  %v20 = vlaneseq
  %v21 = vshrl.u32 %v20, 7
  %v22 = vsub.s32 1, %v21
  %v23 = vrot.slane %v14, %v22
  %v24 = vcombine.low %v19, %v23
  %v26 = vunpack.c.l.s4 1983009808
  %v27 = vunpack.c.0.s8 %v26
  %v28 = vlaneseq
  %v29 = vshrl.u32 %v28, 7
  %v30 = vsub.s32 %v27, %v29
  %v31 = vrot.slane %v24, %v30
  %v33 = vadd.f32 %v13, %v31
  %34 = vst [vmem:[%s3] sm:$0xf] %v33
  // Predicated region
  $region10: #{positional_encoding.1} parent=0 // pred_check
    _
  $region11: #{positional_encoding.1} parent=0 // pred_check_branch
    %36 = sbr.rel (0) target = $region13
  $region12: #{positional_encoding.1} parent=0 // pred_region
    _
  $region13: #{positional_encoding.1} parent=0 // pred_fallthru
    _
  // Predicated region
  $region14: #{positional_encoding.1} parent=0 // pred_check
    _
  $region15: #{positional_encoding.1} parent=0 // pred_check_branch
    %38 = sbr.rel (0) target = $region17
  $region16: #{positional_encoding.1} parent=0 // pred_region
    _
  $region17: #{positional_encoding.1} parent=0 // pred_fallthru
    _

</llo_original>
